<compile_context>
chip_gen: v6e
topology: v6e:2x2x1
jax: 0.10.0
libtpu: 0.0.40
codegen_flags: <defaults>
</compile_context>

<pallas_src>
import functools

import jax
import jax.numpy as jnp
from jax import lax
from jax.experimental import pallas as pl
from jax.experimental.pallas import tpu as pltpu


def _round_up(x, m):
    return ((x + m - 1) // m) * m


def _lovasz_kernel(gts_ref, err_ref, fg_ref, out_ref,
                   carry_ref, prevj_ref, acc_ref):
    # gts_ref : [CB, 1]  f32   total fg count per class (sum over the whole P axis)
    # err_ref : [CB, TP] f32   errors, sorted descending along P
    # fg_ref  : [CB, TP] bf16  foreground indicators, same permutation
    # out_ref : [CB, 1]  f32   per-class Lovasz loss (written on the last P tile)
    # scratch : carry_ref = running cumsum(fg) from previous tiles
    #           prevj_ref = jaccard at the last position of the previous tile
    #           acc_ref   = running per-class dot(err, lovasz_grad)
    p = pl.program_id(1)

    @pl.when(p == 0)
    def _init():
        carry_ref[...] = jnp.zeros_like(carry_ref)
        prevj_ref[...] = jnp.zeros_like(prevj_ref)
        acc_ref[...] = jnp.zeros_like(acc_ref)

    err = err_ref[...]                                   # [CB, TP] f32
    fg = fg_ref[...].astype(jnp.float32)                 # exact: fg is 0/1
    gts = gts_ref[...]                                   # [CB, 1]
    cb, tp = err.shape

    lane = lax.broadcasted_iota(jnp.int32, (cb, tp), 1)

    # Inclusive prefix sum of fg along lanes: Hillis-Steele roll-and-add scan.
    # Rolls run on the XLU slot; prefix sums are small integers (exact in f32).
    csum = fg
    shift = 1
    while shift < tp:
        rolled = pltpu.roll(csum, shift=shift, axis=1)
        csum = csum + jnp.where(lane >= shift, rolled, 0.0)
        shift *= 2

    cum_fg = carry_ref[...] + csum                       # global cumsum(fg)
    pos = (p * tp + lane + 1).astype(jnp.float32)        # 1-based global index
    cum_bg = pos - cum_fg                                # == cumsum(1 - fg)

    intersection = gts - cum_fg
    union = gts + cum_bg                                 # >= 1 everywhere
    # approx=True would push the reciprocal to the otherwise-idle EUP slot; we
    # keep the exact form to preserve ~1e-6 parity with the f32 reference.
    jaccard = 1.0 - intersection * pl.reciprocal(union, approx=False)

    # lovasz_grad: adjacent difference of jaccard along the sorted P axis; the
    # value just before the first element of this tile is carried in prevj_ref
    # (0 before the very first element, matching lovasz_grad's definition).
    j_roll = pltpu.roll(jaccard, shift=1, axis=1)
    j_prev = jnp.where(lane >= 1, j_roll, prevj_ref[...])
    grad = jaccard - j_prev

    acc_ref[...] += jnp.sum(err * grad, axis=1, keepdims=True)
    carry_ref[...] = cum_fg[:, tp - 1:]
    prevj_ref[...] = jaccard[:, tp - 1:]

    @pl.when(p == pl.num_programs(1) - 1)
    def _finish():
        out_ref[...] = acc_ref[...]


def lovasz_multiclass(probas, targets, *, block_p=2048):
    """Lovasz-Softmax loss.

    probas : [B, C, H, W] float32 class probabilities.
    targets: [B, H, W] int32 class indices.
    """
    B, C, H, W = probas.shape
    P = B * H * W

    # flatten_probas: NCHW -> [P, C], labels -> [P]
    prob_flat = jnp.transpose(probas, (0, 2, 3, 1)).reshape(P, C)
    lab_flat = targets.reshape(P)

    classes = jnp.arange(C, dtype=lab_flat.dtype)
    fg = (lab_flat[None, :] == classes[:, None]).astype(jnp.float32)      # [C, P]
    errors = jnp.abs(fg - prob_flat.T.astype(jnp.float32))                # [C, P]

    # TODO(synk): the descending sort itself has no Pallas TPU primitive; it is
    # done as XLA glue, but as a single co-sort (payload carried with the key)
    # instead of argsort + two gather passes.  fg travels as bf16 (exact 0/1).
    neg_err_s, fg_s = lax.sort((-errors, fg.astype(jnp.bfloat16)),
                               dimension=1, num_keys=1)
    err_sorted = -neg_err_s                                               # descending
    gts = jnp.sum(fg, axis=1, keepdims=True)                              # [C, 1]

    # Pad classes to full sublane groups and P to a multiple of the P tile.
    # Padded entries have err == 0 and fg == 0, so they contribute nothing and
    # do not perturb the prefix sums / jaccard values of real entries.
    c_block = 8 if C <= 8 else 16       # bf16 input needs 16-row blocks when C is blocked
    c_pad = _round_up(C, c_block)
    tp = _round_up(min(block_p, _round_up(P, 128)), 128)
    p_pad = _round_up(P, tp)

    err_p = jnp.pad(err_sorted, ((0, c_pad - C), (0, p_pad - P)))
    fg_p = jnp.pad(fg_s, ((0, c_pad - C), (0, p_pad - P)))
    gts_p = jnp.pad(gts, ((0, c_pad - C), (0, 0)))

    grid = (c_pad // c_block, p_pad // tp)
    per_class = pl.pallas_call(
        _lovasz_kernel,
        out_shape=jax.ShapeDtypeStruct((c_pad, 1), jnp.float32),
        grid_spec=pltpu.PrefetchScalarGridSpec(
            num_scalar_prefetch=0,
            grid=grid,
            in_specs=[
                pl.BlockSpec((c_block, 1), lambda c, p: (c, 0)),     # gts
                pl.BlockSpec((c_block, tp), lambda c, p: (c, p)),    # sorted errors
                pl.BlockSpec((c_block, tp), lambda c, p: (c, p)),    # sorted fg (bf16)
            ],
            out_specs=pl.BlockSpec((c_block, 1), lambda c, p: (c, 0)),
            scratch_shapes=[
                pltpu.VMEM((c_block, 1), jnp.float32),   # carried cumsum(fg)
                pltpu.VMEM((c_block, 1), jnp.float32),   # previous tile's last jaccard
                pltpu.VMEM((c_block, 1), jnp.float32),   # per-class loss accumulator
            ],
        ),
        compiler_params=pltpu.CompilerParams(
            dimension_semantics=("parallel", "arbitrary")),
    )(gts_p, err_p, fg_p)

    # classes='present' mean over <= C_pad scalars: trivial XLA glue.
    present = gts_p[:, 0] > 0.0
    den = jnp.sum(present.astype(jnp.float32))
    num = jnp.sum(jnp.where(present, per_class[:, 0], 0.0))
    return jnp.where(den > 0.0, num / den, jnp.float32(0.0))


if __name__ == "__main__":
    B, C, H, W = 2, 4, 16, 16
    key = jax.random.PRNGKey(0)
    k_logits, k_labels = jax.random.split(key)

    logits = jax.random.normal(k_logits, (B, C, H, W), dtype=jnp.float32)
    probas = jax.nn.softmax(logits, axis=1)              # class probabilities
    targets = jax.random.randint(k_labels, (B, H, W), 0, C, dtype=jnp.int32)

    # block_p=128 -> 4 P tiles at this size, exercising the carried scan state.
    loss_fn = jax.jit(functools.partial(lovasz_multiclass, block_p=128))
    loss = jax.block_until_ready(loss_fn(probas, targets))

    # Pure-JAX reference of lovasz_softmax(per_image=False, classes='present').
    prob_flat = jnp.transpose(probas, (0, 2, 3, 1)).reshape(B * H * W, C)
    lab_flat = targets.reshape(B * H * W)
    fg_r = (lab_flat[None, :] == jnp.arange(C, dtype=jnp.int32)[:, None]).astype(jnp.float32)
    errors_r = jnp.abs(fg_r - prob_flat.T)
    order = jnp.argsort(-errors_r, axis=1)
    err_s = jnp.take_along_axis(errors_r, order, axis=1)
    fg_s = jnp.take_along_axis(fg_r, order, axis=1)
    gts_r = jnp.sum(fg_s, axis=1, keepdims=True)
    inter = gts_r - jnp.cumsum(fg_s, axis=1)
    union = gts_r + jnp.cumsum(1.0 - fg_s, axis=1)
    jac = 1.0 - inter / union
    grad = jnp.concatenate([jac[:, :1], jac[:, 1:] - jac[:, :-1]], axis=1)
    per_cls = jnp.sum(err_s * grad, axis=1)
    present = gts_r[:, 0] > 0
    den = jnp.sum(present.astype(jnp.float32))
    ref = jnp.where(den > 0, jnp.sum(jnp.where(present, per_cls, 0.0)) / den, 0.0)

    assert jnp.allclose(loss, ref, rtol=1e-4, atol=1e-4), (loss, ref)
    print("KERNEL_OK")
</pallas_src>

<mosaic_0001>
module attributes {stable_mosaic.version = 11 : i64} {
  func.func @_lovasz_kernel(%arg0: i32, %arg1: i32, %arg2: memref<8x1xf32, #tpu.memory_space<vmem>>, %arg3: memref<8x128xf32, #tpu.memory_space<vmem>>, %arg4: memref<8x128xbf16, #tpu.memory_space<vmem>>, %arg5: memref<8x1xf32, #tpu.memory_space<vmem>>, %arg6: memref<8x1xf32, #tpu.memory_space<vmem>>, %arg7: memref<8x1xf32, #tpu.memory_space<vmem>>, %arg8: memref<8x1xf32, #tpu.memory_space<vmem>>) attributes {dimension_semantics = [#tpu.dimension_semantics<parallel>, #tpu.dimension_semantics<arbitrary>], iteration_bounds = array<i64: 1, 4>, scalar_prefetch = 0 : i64, scratch_operands = 3 : i64, tpu.core_type = #tpu.core_type<tc>, window_params = [{transform_indices = @transform_0, window_bounds = array<i64: 8, 1>}, {transform_indices = @transform_1, window_bounds = array<i64: 8, 128>}, {transform_indices = @transform_2, window_bounds = array<i64: 8, 128>}, {transform_indices = @transform_3, window_bounds = array<i64: 8, 1>}]} {
    %c0_i32 = arith.constant 0 : i32
    %0 = arith.cmpi eq, %arg1, %c0_i32 : i32
    %1 = arith.extui %0 : i1 to i32
    %c0_i32_0 = arith.constant 0 : i32
    %2 = arith.cmpi ne, %1, %c0_i32_0 : i32
    scf.if %2 {
      %cst_37 = arith.constant 0.000000e+00 : f32
      %89 = vector.broadcast %cst_37 : f32 to vector<8x1xf32>
      %c0_38 = arith.constant 0 : index
      %c0_39 = arith.constant 0 : index
      %90 = vector.load %arg6[%c0_38, %c0_39] : memref<8x1xf32, #tpu.memory_space<vmem>>, vector<8x1xf32>
      tpu.vector_store %arg6[%c0_38, %c0_39], %89 {strides = array<i32>} : memref<8x1xf32, #tpu.memory_space<vmem>>, vector<8x1xf32>,
      %cst_40 = arith.constant 0.000000e+00 : f32
      %91 = vector.broadcast %cst_40 : f32 to vector<8x1xf32>
      %c0_41 = arith.constant 0 : index
      %c0_42 = arith.constant 0 : index
      %92 = vector.load %arg7[%c0_41, %c0_42] : memref<8x1xf32, #tpu.memory_space<vmem>>, vector<8x1xf32>
      tpu.vector_store %arg7[%c0_41, %c0_42], %91 {strides = array<i32>} : memref<8x1xf32, #tpu.memory_space<vmem>>, vector<8x1xf32>,
      %cst_43 = arith.constant 0.000000e+00 : f32
      %93 = vector.broadcast %cst_43 : f32 to vector<8x1xf32>
      %c0_44 = arith.constant 0 : index
      %c0_45 = arith.constant 0 : index
      %94 = vector.load %arg8[%c0_44, %c0_45] : memref<8x1xf32, #tpu.memory_space<vmem>>, vector<8x1xf32>
      tpu.vector_store %arg8[%c0_44, %c0_45], %93 {strides = array<i32>} : memref<8x1xf32, #tpu.memory_space<vmem>>, vector<8x1xf32>,
    } else {
    }
    %c0 = arith.constant 0 : index
    %c0_1 = arith.constant 0 : index
    %3 = vector.load %arg3[%c0, %c0_1] : memref<8x128xf32, #tpu.memory_space<vmem>>, vector<8x128xf32>
    %c0_2 = arith.constant 0 : index
    %c0_3 = arith.constant 0 : index
    %4 = vector.load %arg4[%c0_2, %c0_3] : memref<8x128xbf16, #tpu.memory_space<vmem>>, vector<8x128xbf16>
    %5 = arith.extf %4 : vector<8x128xbf16> to vector<8x128xf32>
    %c0_4 = arith.constant 0 : index
    %c0_5 = arith.constant 0 : index
    %6 = vector.load %arg2[%c0_4, %c0_5] : memref<8x1xf32, #tpu.memory_space<vmem>>, vector<8x1xf32>
    %7 = tpu.iota {dimensions = array<i32: 1>} : vector<8x128xi32>
    %c1_i32 = arith.constant 1 : i32
    %8 = tpu.dynamic_rotate %5 by %c1_i32 dim 1 : vector<8x128xf32>, i32 -> vector<8x128xf32>
    %c1_i32_6 = arith.constant 1 : i32
    %9 = vector.broadcast %c1_i32_6 : i32 to vector<8x128xi32>
    %10 = arith.cmpi sge, %7, %9 : vector<8x128xi32>
    %cst = arith.constant 0.000000e+00 : f32
    %11 = vector.broadcast %cst : f32 to vector<8x128xf32>
    %12 = arith.select %10, %8, %11 : vector<8x128xi1>, vector<8x128xf32>
    %13 = arith.addf %5, %12 : vector<8x128xf32>
    %c2_i32 = arith.constant 2 : i32
    %14 = tpu.dynamic_rotate %13 by %c2_i32 dim 1 : vector<8x128xf32>, i32 -> vector<8x128xf32>
    %c2_i32_7 = arith.constant 2 : i32
    %15 = vector.broadcast %c2_i32_7 : i32 to vector<8x128xi32>
    %16 = arith.cmpi sge, %7, %15 : vector<8x128xi32>
    %cst_8 = arith.constant 0.000000e+00 : f32
    %17 = vector.broadcast %cst_8 : f32 to vector<8x128xf32>
    %18 = arith.select %16, %14, %17 : vector<8x128xi1>, vector<8x128xf32>
    %19 = arith.addf %13, %18 : vector<8x128xf32>
    %c4_i32 = arith.constant 4 : i32
    %20 = tpu.dynamic_rotate %19 by %c4_i32 dim 1 : vector<8x128xf32>, i32 -> vector<8x128xf32>
    %c4_i32_9 = arith.constant 4 : i32
    %21 = vector.broadcast %c4_i32_9 : i32 to vector<8x128xi32>
    %22 = arith.cmpi sge, %7, %21 : vector<8x128xi32>
    %cst_10 = arith.constant 0.000000e+00 : f32
    %23 = vector.broadcast %cst_10 : f32 to vector<8x128xf32>
    %24 = arith.select %22, %20, %23 : vector<8x128xi1>, vector<8x128xf32>
    %25 = arith.addf %19, %24 : vector<8x128xf32>
    %c8_i32 = arith.constant 8 : i32
    %26 = tpu.dynamic_rotate %25 by %c8_i32 dim 1 : vector<8x128xf32>, i32 -> vector<8x128xf32>
    %c8_i32_11 = arith.constant 8 : i32
    %27 = vector.broadcast %c8_i32_11 : i32 to vector<8x128xi32>
    %28 = arith.cmpi sge, %7, %27 : vector<8x128xi32>
    %cst_12 = arith.constant 0.000000e+00 : f32
    %29 = vector.broadcast %cst_12 : f32 to vector<8x128xf32>
    %30 = arith.select %28, %26, %29 : vector<8x128xi1>, vector<8x128xf32>
    %31 = arith.addf %25, %30 : vector<8x128xf32>
    %c16_i32 = arith.constant 16 : i32
    %32 = tpu.dynamic_rotate %31 by %c16_i32 dim 1 : vector<8x128xf32>, i32 -> vector<8x128xf32>
    %c16_i32_13 = arith.constant 16 : i32
    %33 = vector.broadcast %c16_i32_13 : i32 to vector<8x128xi32>
    %34 = arith.cmpi sge, %7, %33 : vector<8x128xi32>
    %cst_14 = arith.constant 0.000000e+00 : f32
    %35 = vector.broadcast %cst_14 : f32 to vector<8x128xf32>
    %36 = arith.select %34, %32, %35 : vector<8x128xi1>, vector<8x128xf32>
    %37 = arith.addf %31, %36 : vector<8x128xf32>
    %c32_i32 = arith.constant 32 : i32
    %38 = tpu.dynamic_rotate %37 by %c32_i32 dim 1 : vector<8x128xf32>, i32 -> vector<8x128xf32>
    %c32_i32_15 = arith.constant 32 : i32
    %39 = vector.broadcast %c32_i32_15 : i32 to vector<8x128xi32>
    %40 = arith.cmpi sge, %7, %39 : vector<8x128xi32>
    %cst_16 = arith.constant 0.000000e+00 : f32
    %41 = vector.broadcast %cst_16 : f32 to vector<8x128xf32>
    %42 = arith.select %40, %38, %41 : vector<8x128xi1>, vector<8x128xf32>
    %43 = arith.addf %37, %42 : vector<8x128xf32>
    %c64_i32 = arith.constant 64 : i32
    %44 = tpu.dynamic_rotate %43 by %c64_i32 dim 1 : vector<8x128xf32>, i32 -> vector<8x128xf32>
    %c64_i32_17 = arith.constant 64 : i32
    %45 = vector.broadcast %c64_i32_17 : i32 to vector<8x128xi32>
    %46 = arith.cmpi sge, %7, %45 : vector<8x128xi32>
    %cst_18 = arith.constant 0.000000e+00 : f32
    %47 = vector.broadcast %cst_18 : f32 to vector<8x128xf32>
    %48 = arith.select %46, %44, %47 : vector<8x128xi1>, vector<8x128xf32>
    %49 = arith.addf %43, %48 : vector<8x128xf32>
    %c0_19 = arith.constant 0 : index
    %c0_20 = arith.constant 0 : index
    %50 = vector.load %arg6[%c0_19, %c0_20] : memref<8x1xf32, #tpu.memory_space<vmem>>, vector<8x1xf32>
    %51 = vector.broadcast %50 : vector<8x1xf32> to vector<8x128xf32>
    %52 = arith.addf %51, %49 : vector<8x128xf32>
    %c128_i32 = arith.constant 128 : i32
    %53 = arith.muli %arg1, %c128_i32 : i32
    %54 = vector.broadcast %53 : i32 to vector<8x128xi32>
    %55 = arith.addi %54, %7 : vector<8x128xi32>
    %c1_i32_21 = arith.constant 1 : i32
    %56 = vector.broadcast %c1_i32_21 : i32 to vector<8x128xi32>
    %57 = arith.addi %55, %56 : vector<8x128xi32>
    %58 = arith.sitofp %57 : vector<8x128xi32> to vector<8x128xf32>
    %59 = arith.subf %58, %52 : vector<8x128xf32>
    %60 = vector.broadcast %6 : vector<8x1xf32> to vector<8x128xf32>
    %61 = arith.subf %60, %52 : vector<8x128xf32>
    %62 = vector.broadcast %6 : vector<8x1xf32> to vector<8x128xf32>
    %63 = arith.addf %62, %59 : vector<8x128xf32>
    %64 = tpu.reciprocal %63 : vector<8x128xf32> -> vector<8x128xf32>
    %65 = arith.mulf %61, %64 : vector<8x128xf32>
    %cst_22 = arith.constant 1.000000e+00 : f32
    %66 = vector.broadcast %cst_22 : f32 to vector<8x128xf32>
    %67 = arith.subf %66, %65 : vector<8x128xf32>
    %c1_i32_23 = arith.constant 1 : i32
    %68 = tpu.dynamic_rotate %67 by %c1_i32_23 dim 1 : vector<8x128xf32>, i32 -> vector<8x128xf32>
    %c1_i32_24 = arith.constant 1 : i32
    %69 = vector.broadcast %c1_i32_24 : i32 to vector<8x128xi32>
    %70 = arith.cmpi sge, %7, %69 : vector<8x128xi32>
    %c0_25 = arith.constant 0 : index
    %c0_26 = arith.constant 0 : index
    %71 = vector.load %arg7[%c0_25, %c0_26] : memref<8x1xf32, #tpu.memory_space<vmem>>, vector<8x1xf32>
    %72 = vector.shape_cast %71 : vector<8x1xf32> to vector<8x1xf32>
    %73 = vector.broadcast %72 : vector<8x1xf32> to vector<8x128xf32>
    %74 = arith.select %70, %68, %73 : vector<8x128xi1>, vector<8x128xf32>
    %75 = arith.subf %67, %74 : vector<8x128xf32>
    %c0_27 = arith.constant 0 : index
    %c0_28 = arith.constant 0 : index
    %76 = vector.load %arg8[%c0_27, %c0_28] : memref<8x1xf32, #tpu.memory_space<vmem>>, vector<8x1xf32>
    %77 = arith.mulf %3, %75 : vector<8x128xf32>
    %cst_29 = arith.constant dense<0.000000e+00> : vector<8xf32>
    %78 = vector.multi_reduction <add>, %77, %cst_29 [1] : vector<8x128xf32> to vector<8xf32>
    %79 = vector.shape_cast %78 : vector<8xf32> to vector<8x1xf32>
    %80 = arith.addf %76, %79 : vector<8x1xf32>
    %c0_30 = arith.constant 0 : index
    %c0_31 = arith.constant 0 : index
    %81 = vector.load %arg8[%c0_30, %c0_31] : memref<8x1xf32, #tpu.memory_space<vmem>>, vector<8x1xf32>
    tpu.vector_store %arg8[%c0_30, %c0_31], %80 {strides = array<i32>} : memref<8x1xf32, #tpu.memory_space<vmem>>, vector<8x1xf32>,
    %82 = vector.extract_strided_slice %52 {offsets = [0, 127], sizes = [8, 1], strides = [1, 1]} : vector<8x128xf32> to vector<8x1xf32>
    %c0_32 = arith.constant 0 : index
    %c0_33 = arith.constant 0 : index
    %83 = vector.load %arg6[%c0_32, %c0_33] : memref<8x1xf32, #tpu.memory_space<vmem>>, vector<8x1xf32>
    tpu.vector_store %arg6[%c0_32, %c0_33], %82 {strides = array<i32>} : memref<8x1xf32, #tpu.memory_space<vmem>>, vector<8x1xf32>,
    %84 = vector.extract_strided_slice %67 {offsets = [0, 127], sizes = [8, 1], strides = [1, 1]} : vector<8x128xf32> to vector<8x1xf32>
    %c0_34 = arith.constant 0 : index
    %c0_35 = arith.constant 0 : index
    %85 = vector.load %arg7[%c0_34, %c0_35] : memref<8x1xf32, #tpu.memory_space<vmem>>, vector<8x1xf32>
    tpu.vector_store %arg7[%c0_34, %c0_35], %84 {strides = array<i32>} : memref<8x1xf32, #tpu.memory_space<vmem>>, vector<8x1xf32>,
    %c3_i32 = arith.constant 3 : i32
    %86 = arith.cmpi eq, %arg1, %c3_i32 : i32
    %87 = arith.extui %86 : i1 to i32
    %c0_i32_36 = arith.constant 0 : i32
    %88 = arith.cmpi ne, %87, %c0_i32_36 : i32
    scf.if %88 {
      %c0_37 = arith.constant 0 : index
      %c0_38 = arith.constant 0 : index
      %89 = vector.load %arg8[%c0_37, %c0_38] : memref<8x1xf32, #tpu.memory_space<vmem>>, vector<8x1xf32>
      %c0_39 = arith.constant 0 : index
      %c0_40 = arith.constant 0 : index
      %90 = vector.load %arg5[%c0_39, %c0_40] : memref<8x1xf32, #tpu.memory_space<vmem>>, vector<8x1xf32>
      tpu.vector_store %arg5[%c0_39, %c0_40], %89 {strides = array<i32>} : memref<8x1xf32, #tpu.memory_space<vmem>>, vector<8x1xf32>,
    } else {
    }
    return
  }
  func.func @transform_0(%arg0: i32, %arg1: i32) -> (i32, i32) {
    %c0_i32 = arith.constant 0 : i32
    %c0_i32_0 = arith.constant 0 : i32
    return %arg0, %c0_i32 : i32, i32
  }
  func.func @transform_1(%arg0: i32, %arg1: i32) -> (i32, i32) {
    %c0_i32 = arith.constant 0 : i32
    return %arg0, %arg1 : i32, i32
  }
  func.func @transform_2(%arg0: i32, %arg1: i32) -> (i32, i32) {
    %c0_i32 = arith.constant 0 : i32
    return %arg0, %arg1 : i32, i32
  }
  func.func @transform_3(%arg0: i32, %arg1: i32) -> (i32, i32) {
    %c0_i32 = arith.constant 0 : i32
    %c0_i32_0 = arith.constant 0 : i32
    return %arg0, %c0_i32 : i32, i32
  }
}

</mosaic_0001>

<llo_original>
// kernel: eq.12
$region0: #{eq.12}
  %s0 = inlined_call_operand.vmem [shape: s32[2,16,16], index: 0, kind: input, shape index: {}]
  %s1 = inlined_call_operand.vmem [shape: s32[512], index: 1, kind: output, shape index: {}]
  $region1: #{eq.12} parent=0
    #allocation0 [shape = 'u8[4096]{0}', space=vmem, size = 0x1000, scoped, tag = 'scoped mem for output reshape']
    %v2 = vld [vmem:[%s0] ss:$8 sm:$0xf]
    %vm3 = vcmask 130048
    %4 = vst.msk [vmem:[#allocation0] sm:$0xf] %vm3, %v2
    %s5 = scalar_lea.vmem %s0, 7
    %v6 = vld [vmem:[%s5] ss:$8 sm:$0xf]
    %7 = vrot.lane.b32.xlu0 %v6, 112
    %v8 = vpop.permute.xlu0 %7
    %vm9 = vcmask 1048448
    %10 = vst.msk [vmem:[#allocation0] sm:$0xf] %vm9, %v8
    %s11 = scalar_lea.vmem %s0, 6
    %v12 = vld [vmem:[%s11] ss:$8 sm:$0xf]
    %13 = vrot.lane.b32.xlu0 %v12, 96
    %v14 = vpop.permute.xlu0 %13
    %vm15 = vcmask 917248
    %16 = vst.msk [vmem:[#allocation0] sm:$0xf] %vm15, %v14
    %s17 = scalar_lea.vmem %s0, 5
    %v18 = vld [vmem:[%s17] ss:$8 sm:$0xf]
    %19 = vrot.lane.b32.xlu0 %v18, 80
    %v20 = vpop.permute.xlu0 %19
    %vm21 = vcmask 786048
    %22 = vst.msk [vmem:[#allocation0] sm:$0xf] %vm21, %v20
    %s23 = scalar_lea.vmem %s0, 4
    %v24 = vld [vmem:[%s23] ss:$8 sm:$0xf]
    %25 = vrot.lane.b32.xlu0 %v24, 64
    %v26 = vpop.permute.xlu0 %25
    %vm27 = vcmask 654848
    %28 = vst.msk [vmem:[#allocation0] sm:$0xf] %vm27, %v26
    %s29 = scalar_lea.vmem %s0, 3
    %v30 = vld [vmem:[%s29] ss:$8 sm:$0xf]
    %31 = vrot.lane.b32.xlu0 %v30, 48
    %v32 = vpop.permute.xlu0 %31
    %vm33 = vcmask 523648
    %34 = vst.msk [vmem:[#allocation0] sm:$0xf] %vm33, %v32
    %s35 = scalar_lea.vmem %s0, 2
    %v36 = vld [vmem:[%s35] ss:$8 sm:$0xf]
    %37 = vrot.lane.b32.xlu0 %v36, 32
    %v38 = vpop.permute.xlu0 %37
    %vm39 = vcmask 392448
    %40 = vst.msk [vmem:[#allocation0] sm:$0xf] %vm39, %v38
    %s41 = scalar_lea.vmem %s0, 1
    %v42 = vld [vmem:[%s41] ss:$8 sm:$0xf]
    %43 = vrot.lane.b32.xlu0 %v42, 16
    %v44 = vpop.permute.xlu0 %43
    %vm45 = vcmask 261248
    %46 = vst.msk [vmem:[#allocation0] sm:$0xf] %vm45, %v44
    %s48 = sshll.u32 1, 4
    %s49 = ssub.s32 %s48, 1
    %v51 = vld [vmem:[#allocation0] sm:%s49]
    %s52 = sshll.u32 1, 4
    %s53 = ssub.s32 %s52, 1
    %54 = vst [vmem:[%s1] sm:%s53] %v51

// kernel: neg.3
$region0: #{neg.3}
  #allocation0 [shape = 's32[1]{0}', space=sflag, size = 0x4, scoped, tag = 'scoped memory for neg.3']
  %s0 = inlined_call_operand.vmem [shape: f32[4,512], index: 0, kind: input, shape index: {}]
  %s1 = inlined_call_operand.vmem [shape: f32[4,512], index: 1, kind: output, shape index: {}]
  %v2 = vld [vmem:[%s0] sm:$0xf]
  %3 = xla_tuple %v2
  %4 = xla_tuple %3
  %v5 = vxor.u32 %v2, 2147483648
  %6 = xla_tuple %v5
  %7 = vst [vmem:[%s1] sm:$0xf] %v5
  %s8 = scalar_lea.vmem %s0, 4
  %v9 = vld [vmem:[%s8] sm:$0xf]
  %10 = xla_tuple %v9
  %11 = xla_tuple %10
  %v12 = vxor.u32 %v9, 2147483648
  %13 = xla_tuple %v12
  %s14 = scalar_lea.vmem %s1, 4
  %15 = vst [vmem:[%s14] sm:$0xf] %v12
  %s16 = scalar_lea.vmem %s0, 8
  %v17 = vld [vmem:[%s16] sm:$0xf]
  %18 = xla_tuple %v17
  %19 = xla_tuple %18
  %v20 = vxor.u32 %v17, 2147483648
  %21 = xla_tuple %v20
  %s22 = scalar_lea.vmem %s1, 8
  %23 = vst [vmem:[%s22] sm:$0xf] %v20
  %s24 = scalar_lea.vmem %s0, 12
  %v25 = vld [vmem:[%s24] sm:$0xf]
  %26 = xla_tuple %v25
  %27 = xla_tuple %26
  %v28 = vxor.u32 %v25, 2147483648
  %29 = xla_tuple %v28
  %s30 = scalar_lea.vmem %s1, 12
  %31 = vst [vmem:[%s30] sm:$0xf] %v28

// kernel: lovasz_multiclass.1
$region0: #{lovasz_multiclass.1}
  #allocation0 [shape = 'u32[]', space=smem, size = 0x4, offset = 0x4, fixed_abs, tag = 'smem constant byte address 0x4 - core index']
  #allocation1 [shape = 'u32[144,128]{1,0:T(1,128)}', space=vmem, size = 0x12000, scoped, tag = 'internal scratch']
  #allocation2 [shape = 'f32[8,1]{1,0:T(8,128)}', space=vmem, size = 0x1000, scoped, tag = 'scratch operand']
  #allocation3 [shape = 'f32[8,1]{1,0:T(8,128)}', space=vmem, size = 0x1000, scoped, tag = 'scratch operand']
  #allocation4 [shape = 'f32[8,1]{1,0:T(8,128)}', space=vmem, size = 0x1000, scoped, tag = 'scratch operand']
  %s0 = inlined_call_operand.vmem [shape: f32[8,1], index: 0, kind: input, shape index: {}]
  %s1 = inlined_call_operand.vmem [shape: f32[8,512], index: 1, kind: input, shape index: {}]
  %s2 = inlined_call_operand.vmem [shape: bf16[8,512], index: 2, kind: input, shape index: {}]
  %s3 = inlined_call_operand.vmem [shape: f32[8,1], index: 3, kind: output, shape index: {}]
  %s4 = sld [smem:[#allocation0]]
  $region53: #{lovasz_multiclass.1} parent=0
    _
  %s6 = ssub.s32 1, %s4
  %s7 = scalar_select 0, %s6, %s4
  loop: start=0, step=1, limit=6
  $region2: #{lovasz_multiclass.1} parent=0 // loop_pre_header
    _
  $region3: #{lovasz_multiclass.1} parent=0 // loop_header
    %s9 = sphi 0, %s13
    %p10 = scmp.ge.s32.totalorder %s9, 6
    %s16 = sphi 0, %s28
    %s17 = sphi 0, %s24
    %s18 = sphi 0, %s16
    %s19 = sphi 0, %s17
    %s20 = sphi 0, %s18
    %s21 = sphi 0, %s19
    %s31 = sphi 0, %s33
    %s34 = sphi 0, %s31
    %s35 = sphi 0, %s34
    %s51 = sphi 0, %s35
    %s59 = sphi 0, %s61
    %s62 = sphi 0, %s59
    %s63 = sphi 0, %s62
    %s79 = sphi 0, %s63
    %s87 = sphi 0, %s89
    %s90 = sphi 0, %s87
    %s91 = sphi 0, %s90
    %s107 = sphi 0, %s91
    %s113 = sphi 0, %s115
    %s116 = sphi 0, %s113
    %s117 = sphi 0, %s116
    %s133 = sphi 0, %s117
  $region4: #{lovasz_multiclass.1} parent=0 // loop_header_branch
    %12 = sbr.rel (%p10) target = $region8
  $region5: #{lovasz_multiclass.1} parent=0 // loop_body
    %s14 = ssub.s32 %s9, 1
    %s15 = ssub.s32 %s9, 2
    %s22 = sadd.s32 1, %s17
    %p23 = scmp.ge.s32.totalorder %s22, 4
    %s24 = scalar_select %p23, 0, %s22
    %s25 = sadd.s32 1, %s16
    %s26 = scalar_select %p23, %s25, %s16
    %p27 = scmp.ge.s32.totalorder %s26, 1
    %s28 = scalar_select %p27, 0, %s26
    %s29 = ssub.s32 %s16, %s28
    %p30 = scmp.eq.s32.totalorder %s29, 0
    %s32 = sadd.s32 %s31, 1
    %s33 = scalar_select %p30, %s31, %s32
    %p36 = pneg %p30
    %p37 = scmp.eq.s32.totalorder %s9, 3
    %p38 = por %p36, %p37
    %p39 = scmp.ne.s32.totalorder %s31, %s34
    %p40 = scmp.eq.s32.totalorder %s9, 0
    %p41 = por %p39, %p40
    %p42 = scmp.ne.s32.totalorder %s31, %s34
    %p43 = scmp.eq.s32.totalorder %s14, 3
    %p44 = por %p42, %p43
    %p45 = scmp.ne.s32.totalorder %s34, %s35
    %p46 = scmp.eq.s32.totalorder %s14, 0
    %p47 = por %p45, %p46
    %p48 = scmp.ne.s32.totalorder %s34, %s35
    %p49 = scmp.eq.s32.totalorder %s15, 3
    %p50 = por %p48, %p49
    %p52 = scmp.ne.s32.totalorder %s35, %s51
    %p53 = scmp.eq.s32.totalorder %s15, 0
    %p54 = por %p52, %p53
    %s55 = ssub.s32 %s16, %s28
    %s56 = ssub.s32 %s17, %s24
    %s57 = sor.u32 %s55, %s56
    %p58 = scmp.eq.s32.totalorder %s57, 0
    %s60 = sadd.s32 %s59, 1
    %s61 = scalar_select %p58, %s59, %s60
    %p64 = pneg %p58
    %p65 = scmp.eq.s32.totalorder %s9, 3
    %p66 = por %p64, %p65
    %p67 = scmp.ne.s32.totalorder %s59, %s62
    %p68 = scmp.eq.s32.totalorder %s9, 0
    %p69 = por %p67, %p68
    %p70 = scmp.ne.s32.totalorder %s59, %s62
    %p71 = scmp.eq.s32.totalorder %s14, 3
    %p72 = por %p70, %p71
    %p73 = scmp.ne.s32.totalorder %s62, %s63
    %p74 = scmp.eq.s32.totalorder %s14, 0
    %p75 = por %p73, %p74
    %p76 = scmp.ne.s32.totalorder %s62, %s63
    %p77 = scmp.eq.s32.totalorder %s15, 3
    %p78 = por %p76, %p77
    %p80 = scmp.ne.s32.totalorder %s63, %s79
    %p81 = scmp.eq.s32.totalorder %s15, 0
    %p82 = por %p80, %p81
    %s83 = ssub.s32 %s16, %s28
    %s84 = ssub.s32 %s17, %s24
    %s85 = sor.u32 %s83, %s84
    %p86 = scmp.eq.s32.totalorder %s85, 0
    %s88 = sadd.s32 %s87, 1
    %s89 = scalar_select %p86, %s87, %s88
    %p92 = pneg %p86
    %p93 = scmp.eq.s32.totalorder %s9, 3
    %p94 = por %p92, %p93
    %p95 = scmp.ne.s32.totalorder %s87, %s90
    %p96 = scmp.eq.s32.totalorder %s9, 0
    %p97 = por %p95, %p96
    %p98 = scmp.ne.s32.totalorder %s87, %s90
    %p99 = scmp.eq.s32.totalorder %s14, 3
    %p100 = por %p98, %p99
    %p101 = scmp.ne.s32.totalorder %s90, %s91
    %p102 = scmp.eq.s32.totalorder %s14, 0
    %p103 = por %p101, %p102
    %p104 = scmp.ne.s32.totalorder %s90, %s91
    %p105 = scmp.eq.s32.totalorder %s15, 3
    %p106 = por %p104, %p105
    %p108 = scmp.ne.s32.totalorder %s91, %s107
    %p109 = scmp.eq.s32.totalorder %s15, 0
    %p110 = por %p108, %p109
    %s111 = ssub.s32 %s16, %s28
    %p112 = scmp.eq.s32.totalorder %s111, 0
    %s114 = sadd.s32 %s113, 1
    %s115 = scalar_select %p112, %s113, %s114
    %p118 = pneg %p112
    %p119 = scmp.eq.s32.totalorder %s9, 3
    %p120 = por %p118, %p119
    %p121 = scmp.ne.s32.totalorder %s113, %s116
    %p122 = scmp.eq.s32.totalorder %s9, 0
    %p123 = por %p121, %p122
    %p124 = scmp.ne.s32.totalorder %s113, %s116
    %p125 = scmp.eq.s32.totalorder %s14, 3
    %p126 = por %p124, %p125
    %p127 = scmp.ne.s32.totalorder %s116, %s117
    %p128 = scmp.eq.s32.totalorder %s14, 0
    %p129 = por %p127, %p128
    %p130 = scmp.ne.s32.totalorder %s116, %s117
    %p131 = scmp.eq.s32.totalorder %s15, 3
    %p132 = por %p130, %p131
    %p134 = scmp.ne.s32.totalorder %s117, %s133
    %p135 = scmp.eq.s32.totalorder %s15, 0
    %p136 = por %p134, %p135
    %p137 = scmp.le.s32.totalorder 1, %s9
    %p138 = scmp.lt.s32.totalorder %s9, 5
    %p139 = pnand %p137, %p138
    %p140 = pneg %p139
    // Predicated region
    $region9: #{lovasz_multiclass.1} parent=5 // pred_check
      _
    $region10: #{lovasz_multiclass.1} parent=5 // pred_check_branch
      %142 = sbr.rel (%p139) target = $region12
    $region11: #{lovasz_multiclass.1} parent=5 // pred_region
      %s143 = ssub.s32 %s9, 1
      // Predicated region
      $region13: #{lovasz_multiclass.1} parent=11 // pred_check
        %p144 = pneg %p47
      $region14: #{lovasz_multiclass.1} parent=11 // pred_check_branch
        %146 = sbr.rel (%p144) target = $region16
      $region15: #{lovasz_multiclass.1} parent=11 // pred_region
        %p147 = scmp.lt.s32.totalorder %s18, 0
        %s148 = scalar_select %p147, %s18, 0
        %s149 = smul.addr %s148, 8
        %s150 = scalar_lea.vmem %s0, %s149
      $region16: #{lovasz_multiclass.1} parent=11 // pred_fallthru
        _
    $region12: #{lovasz_multiclass.1} parent=5 // pred_fallthru
      _
    %p151 = scmp.lt.s32.totalorder %s9, 4
    // Predicated region
    $region17: #{lovasz_multiclass.1} parent=5 // pred_check
      %p152 = pneg %p151
    $region18: #{lovasz_multiclass.1} parent=5 // pred_check_branch
      %154 = sbr.rel (%p152) target = $region20
    $region19: #{lovasz_multiclass.1} parent=5 // pred_region
      // Predicated region
      $region21: #{lovasz_multiclass.1} parent=19 // pred_check
        %p155 = pneg %p69
      $region22: #{lovasz_multiclass.1} parent=19 // pred_check_branch
        %157 = sbr.rel (%p155) target = $region24
      $region23: #{lovasz_multiclass.1} parent=19 // pred_region
        %p158 = scmp.lt.s32.totalorder %s16, 0
        %s159 = scalar_select %p158, %s16, 0
        %p160 = scmp.lt.s32.totalorder %s17, 3
        %s161 = scalar_select %p160, %s17, 3
        %s162 = smul.addr %s159, 4
        %s163 = sadd.s32 %s161, %s162
        %s164 = smul.addr %s163, 8
        %s165 = scalar_lea.vmem %s1, %s164
      $region24: #{lovasz_multiclass.1} parent=19 // pred_fallthru
        _
      // Predicated region
      $region25: #{lovasz_multiclass.1} parent=19 // pred_check
        %p166 = pneg %p97
      $region26: #{lovasz_multiclass.1} parent=19 // pred_check_branch
        %168 = sbr.rel (%p166) target = $region28
      $region27: #{lovasz_multiclass.1} parent=19 // pred_region
        %p169 = scmp.lt.s32.totalorder %s16, 0
        %s170 = scalar_select %p169, %s16, 0
        %p171 = scmp.lt.s32.totalorder %s17, 3
        %s172 = scalar_select %p171, %s17, 3
        %s173 = smul.addr %s170, 4
        %s174 = sadd.s32 %s172, %s173
        %s175 = smul.addr %s174, 4
        %s176 = scalar_lea.vmem %s2, %s175
      $region28: #{lovasz_multiclass.1} parent=19 // pred_fallthru
        _
    $region20: #{lovasz_multiclass.1} parent=5 // pred_fallthru
      _
    %p177 = scmp.le.s32.totalorder 1, %s9
    %p178 = scmp.lt.s32.totalorder %s9, 5
    %p179 = pnand %p177, %p178
    %p180 = pneg %p179
    // Predicated region
    $region29: #{lovasz_multiclass.1} parent=5 // pred_check
      _
    $region30: #{lovasz_multiclass.1} parent=5 // pred_check_branch
      %182 = sbr.rel (%p179) target = $region32
    $region31: #{lovasz_multiclass.1} parent=5 // pred_region
      %s183 = ssub.s32 %s9, 1
      %p184 = scmp.lt.s32.totalorder %s18, 0
      %s185 = scalar_select %p184, %s18, 0
      %s186 = smul.addr %s185, 8
      %s187 = scalar_lea.vmem %s0, %s186
      %p188 = pneg %p47
      %p189 = pneg %p44
      %p190 = scmp.lt.s32.totalorder %s18, 0
      %s191 = scalar_select %p190, %s18, 0
      %p192 = scmp.lt.s32.totalorder %s19, 3
      %s193 = scalar_select %p192, %s19, 3
      %s194 = smul.addr %s191, 4
      %s195 = sadd.s32 %s193, %s194
      %s196 = smul.addr %s195, 8
      %s197 = scalar_lea.vmem %s1, %s196
      %p198 = pneg %p75
      %p199 = pneg %p72
      %p200 = scmp.lt.s32.totalorder %s18, 0
      %s201 = scalar_select %p200, %s18, 0
      %p202 = scmp.lt.s32.totalorder %s19, 3
      %s203 = scalar_select %p202, %s19, 3
      %s204 = smul.addr %s201, 4
      %s205 = sadd.s32 %s203, %s204
      %s206 = smul.addr %s205, 4
      %s207 = scalar_lea.vmem %s2, %s206
      %p208 = pneg %p103
      %p209 = pneg %p100
      %p210 = pneg %p129
      %p211 = pneg %p126
      %p212 = scmp.lt.s32.totalorder %s18, 0
      %s213 = scalar_select %p212, %s18, 0
      %s214 = smul.addr %s213, 8
      %s215 = scalar_lea.vmem %s3, %s214
      %p216 = scmp.lt.s32.totalorder %s18, 0
      %s217 = scalar_select %p216, %s18, 0
      %s218 = smul.addr %s217, 8
      %s219 = scalar_lea.vmem %s0, %s218
      %p220 = scmp.lt.s32.totalorder %s18, 0
      %s221 = scalar_select %p220, %s18, 0
      %p222 = scmp.lt.s32.totalorder %s19, 3
      %s223 = scalar_select %p222, %s19, 3
      %s224 = smul.addr %s221, 4
      %s225 = sadd.s32 %s223, %s224
      %s226 = smul.addr %s225, 8
      %s227 = scalar_lea.vmem %s1, %s226
      %p228 = scmp.lt.s32.totalorder %s18, 0
      %s229 = scalar_select %p228, %s18, 0
      %p230 = scmp.lt.s32.totalorder %s19, 3
      %s231 = scalar_select %p230, %s19, 3
      %s232 = smul.addr %s229, 4
      %s233 = sadd.s32 %s231, %s232
      %s234 = smul.addr %s233, 4
      %s235 = scalar_lea.vmem %s2, %s234
      %p236 = scmp.lt.s32.totalorder %s18, 0
      %s237 = scalar_select %p236, %s18, 0
      %s238 = smul.addr %s237, 8
      %s239 = scalar_lea.vmem %s3, %s238
      %p240 = scmp.eq.s32.totalorder %s19, 0
      // Predicated region
      $region33: #{lovasz_multiclass.1} parent=31 // pred_check
        %p241 = pneg %p240
      $region34: #{lovasz_multiclass.1} parent=31 // pred_check_branch
        %243 = sbr.rel (%p241) target = $region36
      $region35: #{lovasz_multiclass.1} parent=31 // pred_region
        %vm244 = vcmask 7168
        %245 = vst.msk [vmem:[#allocation2] sm:$0xff] %vm244, 0.0
        %246 = vst.msk [vmem:[#allocation3] sm:$0xff] %vm244, 0.0
        %247 = vst.msk [vmem:[#allocation4] sm:$0xff] %vm244, 0.0
      $region36: #{lovasz_multiclass.1} parent=31 // pred_fallthru
        _
      %v248 = vld [vmem:[%s227] sm:$0xff]
      %v249 = vld [vmem:[%s235] sm:$0xf]
      %v250 = vunpack.c.l.bf16 %v249
      %v251 = vld [vmem:[%s219] sm:$0xff]
      %v252 = vlaneseq
      %v253 = vand.u32 %v252, 127
      %254 = vrot.lane.b32.xlu0 %v250, 1
      %v255 = vpop.permute.xlu0 %254
      %vm256 = vcmp.ge.s32.totalorder %v253, 1
      %v257 = vsel %vm256, %v255, 0.0
      %v258 = vadd.f32 %v250, %v257
      %259 = vrot.lane.b32.xlu0 %v258, 2
      %v260 = vpop.permute.xlu0 %259
      %vm261 = vcmp.ge.s32.totalorder %v253, 2
      %v262 = vsel %vm261, %v260, 0.0
      %v263 = vadd.f32 %v258, %v262
      %264 = vrot.lane.b32.xlu0 %v263, 4
      %v265 = vpop.permute.xlu0 %264
      %vm266 = vcmp.ge.s32.totalorder %v253, 4
      %v267 = vsel %vm266, %v265, 0.0
      %v268 = vadd.f32 %v263, %v267
      %269 = vrot.lane.b32.xlu0 %v268, 8
      %v270 = vpop.permute.xlu0 %269
      %vm271 = vcmp.ge.s32.totalorder %v253, 8
      %v272 = vsel %vm271, %v270, 0.0
      %v273 = vadd.f32 %v268, %v272
      %274 = vrot.lane.b32.xlu0 %v273, 16
      %v275 = vpop.permute.xlu0 %274
      %vm276 = vcmp.ge.s32.totalorder %v253, 16
      %v277 = vsel %vm276, %v275, 0.0
      %v278 = vadd.f32 %v273, %v277
      %279 = vrot.lane.b32.xlu0 %v278, 32
      %v280 = vpop.permute.xlu0 %279
      %vm281 = vcmp.ge.s32.totalorder %v253, 32
      %v282 = vsel %vm281, %v280, 0.0
      %v283 = vadd.f32 %v278, %v282
      %284 = vrot.lane.b32.xlu0 %v283, 64
      %v285 = vpop.permute.xlu0 %284
      %vm286 = vcmp.ge.s32.totalorder %v253, 64
      %v287 = vsel %vm286, %v285, 0.0
      %v288 = vadd.f32 %v283, %v287
      %v289 = vld [vmem:[#allocation2] sm:$0xff]
      %291 = vset.pattern.permute.xlu0 0
      %292 = vperm.xlu0 %291, %v289
      %v293 = vpop.permute.xlu0 %292
      %v295 = vadd.f32 %v293, %v288
      %s296 = smul.u32 %s19, 128
      %v297 = vstv %s296
      %v298 = vadd.s32 %v297, %v253
      %v299 = vadd.s32 %v298, 1
      %v300 = vcvt.s32.f32 %v299
      %v301 = vsub.f32 %v300, %v295
      %303 = vset.pattern.permute.xlu0 0
      %304 = vperm.xlu0 %303, %v251
      %v305 = vpop.permute.xlu0 %304
      %v307 = vsub.f32 %v305, %v295
      %v308 = vadd.f32 %v305, %v301
      %v309 = vrcp.pop %v308
      %v310 = vmul.f32 %v307, %v309
      %v311 = vsub.f32 1.0, %v310
      %312 = vrot.lane.b32.xlu0 %v311, 1
      %v313 = vpop.permute.xlu0 %312
      %v314 = vld [vmem:[#allocation3] sm:$0xff]
      %316 = vset.pattern.permute.xlu0 0
      %317 = vperm.xlu0 %316, %v314
      %v318 = vpop.permute.xlu0 %317
      %v320 = vsel %vm256, %v313, %v318
      %v321 = vsub.f32 %v311, %v320
      %v322 = vld [vmem:[#allocation4] sm:$0xff]
      %v323 = vmul.f32 %v248, %v321
      %324 = vadd.xlane.f32.xlu0 %v323
      %v325 = vpop.xlane.xlu0 %324
      %v326 = vadd.f32 %v322, %v325
      %vm327 = vcmask 7168
      %328 = vst.msk [vmem:[#allocation4] sm:$0xff] %vm327, %v326
      %330 = vrot.lane.b32.xlu0 %v295, 1
      %v331 = vpop.permute.xlu0 %330
      %333 = vst.msk [vmem:[#allocation2] sm:$0xff] %vm327, %v331
      %335 = vrot.lane.b32.xlu0 %v311, 1
      %v336 = vpop.permute.xlu0 %335
      %338 = vst.msk [vmem:[#allocation3] sm:$0xff] %vm327, %v336
      %p339 = scmp.eq.s32.totalorder %s19, 3
      // Predicated region
      $region37: #{lovasz_multiclass.1} parent=31 // pred_check
        %p340 = pneg %p339
      $region38: #{lovasz_multiclass.1} parent=31 // pred_check_branch
        %342 = sbr.rel (%p340) target = $region40
      $region39: #{lovasz_multiclass.1} parent=31 // pred_region
        %v343 = vld [vmem:[#allocation4] sm:$0xff]
        %344 = vst.msk [vmem:[%s239] sm:$0xff] %vm327, %v343
      $region40: #{lovasz_multiclass.1} parent=31 // pred_fallthru
        _
      %p345 = scmp.lt.s32.totalorder %s18, 0
      %s346 = scalar_select %p345, %s18, 0
      %s347 = smul.addr %s346, 8
      %s348 = scalar_lea.vmem %s3, %s347
      // Predicated region
      $region41: #{lovasz_multiclass.1} parent=31 // pred_check
        %p349 = pneg %p126
      $region42: #{lovasz_multiclass.1} parent=31 // pred_check_branch
        %351 = sbr.rel (%p349) target = $region44
      $region43: #{lovasz_multiclass.1} parent=31 // pred_region
        _
      $region44: #{lovasz_multiclass.1} parent=31 // pred_fallthru
        _
      // Predicated region
      $region45: #{lovasz_multiclass.1} parent=31 // pred_check
        %p352 = pneg %p126
      $region46: #{lovasz_multiclass.1} parent=31 // pred_check_branch
        %354 = sbr.rel (%p352) target = $region48
      $region47: #{lovasz_multiclass.1} parent=31 // pred_region
        %p355 = scmp.lt.s32.totalorder %s18, 0
        %s356 = scalar_select %p355, %s18, 0
        %s357 = smul.addr %s356, 8
        %s358 = scalar_lea.vmem %s3, %s357
      $region48: #{lovasz_multiclass.1} parent=31 // pred_fallthru
        _
    $region32: #{lovasz_multiclass.1} parent=5 // pred_fallthru
      _
    %p359 = scmp.le.s32.totalorder 2, %s9
    // Predicated region
    $region49: #{lovasz_multiclass.1} parent=5 // pred_check
      %p360 = pneg %p359
    $region50: #{lovasz_multiclass.1} parent=5 // pred_check_branch
      %362 = sbr.rel (%p360) target = $region52
    $region51: #{lovasz_multiclass.1} parent=5 // pred_region
      %s363 = ssub.s32 %s9, 2
    $region52: #{lovasz_multiclass.1} parent=5 // pred_fallthru
      _
  $region6: #{lovasz_multiclass.1} parent=0 // loop_footer
    %s13 = sadd.s32 1, %s9
  $region7: #{lovasz_multiclass.1} parent=0 // loop_footer_branch
    %8 = sbr.rel target = $region3
  $region8: #{lovasz_multiclass.1} parent=0 // loop_exit
    _

</llo_original>
